<compile_context>
chip_gen: v7x
topology: tpu7x:2x2x1
jax: 0.10.0
libtpu: 0.0.40
codegen_flags: <defaults>
</compile_context>

<pallas_src>
import functools
import math

import jax
import jax.numpy as jnp
from jax import lax
from jax.experimental import pallas as pl
from jax.experimental.pallas import tpu as pltpu

_NEG_LARGE = -1e30  # additive mask for out-of-range sequence positions


def _round_up(x, m):
    return (x + m - 1) // m * m


def _latent_attn_body(x_ref, w_ref, bias_ref, mask_ref,        # inputs (mask may be None)
                      reps_ref, scores_ref,                    # outputs (resident over si)
                      mstash_ref, m_ref, l_ref, acc_ref,       # scratch
                      *, scale, seq_len, n_seq_blocks):
    si = pl.program_id(1)
    bb, bs, _ = x_ref.shape

    @pl.when(si == 0)
    def _init():
        m_ref[...] = jnp.full_like(m_ref, -jnp.inf)
        l_ref[...] = jnp.zeros_like(l_ref)
        acc_ref[...] = jnp.zeros_like(acc_ref)

    # Inputs in this script are f32, so the cast is a no-op.  For bf16 inputs
    # the multiplies can stay in bf16 on v6e/v7x (native bf16 VALU) with f32
    # accumulation only; v5e has NO bf16 VPU, so the f32 upcast is correct there.
    xf = x_ref[...].astype(jnp.float32)                 # (bb, bs, H)

    needs_tail_mask = (n_seq_blocks * bs != seq_len)    # static
    if needs_tail_mask:
        col = lax.broadcasted_iota(jnp.int32, (bb, bs), 1)
        valid = (si * bs + col) < seq_len               # (bb, bs)
        # Zero the garbage tail of the x tile so 0 * garbage cannot poison the
        # MXU contraction below.
        xf = jnp.where(valid[:, :, None], xf, 0.0)

    w = w_ref[0, :].astype(jnp.float32)                 # (H,)
    b = bias_ref[0, 0]                                  # SMEM scalar

    # Linear(H -> 1): VPU multiply + minor-axis (lane) reduce.
    # TODO(synk): on v7x (3.2 TB/s HBM) this reduction could also move to the
    # MXU if the VALU/XLU slots become binding.
    key_z = jnp.sum(xf * w, axis=-1) + b                # (bb, bs)
    s_act = jnp.maximum(key_z, 0.0)                     # relu (module default)
    if mask_ref is not None:
        s_act = s_act + mask_ref[...].astype(jnp.float32)
    scaled = s_act * scale                              # scale = 1/sqrt(global B)
    if needs_tail_mask:
        scaled = jnp.where(valid, scaled, _NEG_LARGE)

    # Online-softmax running statistics.
    m_prev = m_ref[...]                                                 # (bb, 1)
    m_new = jnp.maximum(m_prev, jnp.max(scaled, axis=-1, keepdims=True))
    alpha = jnp.exp(m_prev - m_new)
    p = jnp.exp(scaled - m_new)                                         # (bb, bs), un-normalized
    l_ref[...] = alpha * l_ref[...] + jnp.sum(p, axis=-1, keepdims=True)

    # Weighted sum on the MXU (batched matvec) -> (bb, H); avoids materializing
    # the (bb, bs, H) broadcast product and the associated vreg pressure.
    pw = jnp.einsum("bqs,bsh->bqh", p[:, None, :], xf,
                    preferred_element_type=jnp.float32)[:, 0, :]
    acc_ref[...] = alpha * acc_ref[...] + pw
    m_ref[...] = m_new

    if n_seq_blocks > 1:
        # Stash un-normalized p directly in the resident scores block plus the
        # running max at this step; finalize rescales each block (no 2nd exp).
        mstash_ref[si] = m_new
        start = pl.multiple_of(si * bs, 128)            # bs % 128 == 0 when n_seq_blocks > 1
        scores_ref[:, pl.ds(start, bs)] = p.astype(scores_ref.dtype)

    @pl.when(si == n_seq_blocks - 1)
    def _finalize():
        inv_l = pl.reciprocal(l_ref[...], approx=True)  # EUP slot
        reps_ref[...] = (acc_ref[...] * inv_l).astype(reps_ref.dtype)
        if n_seq_blocks == 1:
            # Whole sequence resident in one step: normalize p directly.
            scores_ref[...] = (p * inv_l).astype(scores_ref.dtype)
        else:
            m_fin = m_new

            def body(j, carry):
                st = pl.multiple_of(j * bs, 128)
                corr = jnp.exp(mstash_ref[j] - m_fin) * inv_l           # (bb, 1)
                blk = scores_ref[:, pl.ds(st, bs)].astype(jnp.float32)
                scores_ref[:, pl.ds(st, bs)] = (blk * corr).astype(scores_ref.dtype)
                return carry

            lax.fori_loop(0, n_seq_blocks, body, 0)


def _kernel_with_mask(x_ref, w_ref, mask_ref, bias_ref, reps_ref, scores_ref,
                      mstash_ref, m_ref, l_ref, acc_ref, **kw):
    _latent_attn_body(x_ref, w_ref, bias_ref, mask_ref, reps_ref, scores_ref,
                      mstash_ref, m_ref, l_ref, acc_ref, **kw)


def _kernel_no_mask(x_ref, w_ref, bias_ref, reps_ref, scores_ref,
                    mstash_ref, m_ref, l_ref, acc_ref, **kw):
    _latent_attn_body(x_ref, w_ref, bias_ref, None, reps_ref, scores_ref,
                      mstash_ref, m_ref, l_ref, acc_ref, **kw)


def latent_self_attention(inputs, weight, bias, attention_mask=None,
                          *, block_b=None, block_s=None):
    """inputs: (B, S, H); weight: (1, H); bias: (1,); mask: (B, S) or None."""
    B, S, H = inputs.shape
    dtype = inputs.dtype
    itemsize = jnp.dtype(dtype).itemsize
    # PyTorch divides by key_z.size(0) ** 0.5 -> the GLOBAL batch size.
    scale = 1.0 / math.sqrt(B)

    # --- batch tile: tied to sublane packing of the I/O dtype ----------------
    min_rows = max(8, 32 // itemsize)        # 8 f32 / 16 bf16 / 32 int8
    tgt_bb = block_b if block_b is not None else min_rows
    if B <= tgt_bb:
        bb = B                               # full-extent batch block (always legal)
    else:
        bb = max(min_rows, (tgt_bb // min_rows) * min_rows)
    grid_b = pl.cdiv(B, bb)
    # NOTE(v7x): grid_b == 1 means the "parallel" axis cannot shard across the
    # two TensorCores; shrink block_b for larger B if that matters.

    # --- sequence tile from the per-generation VMEM budget -------------------
    try:
        vmem_cap = pltpu.get_tpu_info().vmem_capacity_bytes
    except Exception:                        # pragma: no cover - interpret/CPU tracing
        vmem_cap = 64 * 1024 * 1024
    vmem_limit = min(vmem_cap * 5 // 8, 100 * 1024 * 1024)   # ~40 MiB v7x, ~80 MiB v5e/v6e

    mask_itemsize = (jnp.dtype(attention_mask.dtype).itemsize
                     if attention_mask is not None else 0)
    # Resident consumers besides the double-buffered x tile: scores block,
    # reps accumulator (stats/stash are tiny and folded into the margin).
    resident = bb * _round_up(S, 128) * itemsize + bb * H * 4
    per_row_x = bb * (H * itemsize + mask_itemsize)   # bytes per sequence row, x2 buffers
    budget = max(vmem_limit - resident - (6 << 20), 2 * per_row_x * 128)
    bs_cap = max(128, (budget // (2 * per_row_x)) // 128 * 128)
    bs_cap = min(bs_cap, block_s if block_s is not None else 2048)

    if S <= bs_cap:
        bs, n_s = S, 1                        # whole sequence resident, no tail mask
    else:
        bs = max(128, (bs_cap // 128) * 128)  # 128-multiple so dynamic stores stay lane-aligned
        n_s = pl.cdiv(S, bs)
    s_pad = n_s * bs                          # scores OUTPUT only is allocated padded

    # Keep the compiler limit consistent with what we actually request.
    need = 2 * per_row_x * bs + resident + (6 << 20)
    vmem_limit = int(min(max(vmem_limit, need), max(vmem_cap, need)))

    bias2d = jnp.asarray(bias, dtype=jnp.float32).reshape(1, 1)

    x_spec = pl.BlockSpec((bb, bs, H), lambda bi, si: (bi, si, 0))
    w_spec = pl.BlockSpec((1, H), lambda bi, si: (0, 0))
    bias_spec = pl.BlockSpec(memory_space=pltpu.MemorySpace.SMEM)
    out_specs = (
        pl.BlockSpec((bb, H), lambda bi, si: (bi, 0)),        # reps (resident over si)
        pl.BlockSpec((bb, s_pad), lambda bi, si: (bi, 0)),    # scores (resident over si)
    )
    scratch = [
        pltpu.VMEM((n_s, bb, 1), jnp.float32),   # per-block running-max stash
        pltpu.VMEM((bb, 1), jnp.float32),        # running max
        pltpu.VMEM((bb, 1), jnp.float32),        # running denom
        pltpu.VMEM((bb, H), jnp.float32),        # reps accumulator
    ]
    static = dict(scale=scale, seq_len=S, n_seq_blocks=n_s)

    if attention_mask is not None:
        kernel = functools.partial(_kernel_with_mask, **static)
        in_specs = [x_spec, w_spec,
                    pl.BlockSpec((bb, bs), lambda bi, si: (bi, si)),
                    bias_spec]
        operands = (inputs, weight, attention_mask, bias2d)
    else:
        kernel = functools.partial(_kernel_no_mask, **static)
        in_specs = [x_spec, w_spec, bias_spec]
        operands = (inputs, weight, bias2d)

    reps, scores = pl.pallas_call(
        kernel,
        out_shape=(jax.ShapeDtypeStruct((B, H), dtype),
                   jax.ShapeDtypeStruct((B, s_pad), dtype)),
        grid=(grid_b, n_s),
        in_specs=in_specs,
        out_specs=out_specs,
        scratch_shapes=scratch,
        compiler_params=pltpu.CompilerParams(
            dimension_semantics=("parallel", "arbitrary"),
            vmem_limit_bytes=vmem_limit),
    )(*operands)

    if s_pad != S:
        scores = scores[:, :S]
    return reps, scores


def _reference(inputs, weight, bias, attention_mask=None):
    """Pure-JAX reference mirroring the PyTorch forward."""
    B = inputs.shape[0]
    key_z = jnp.einsum("bsh,kh->bsk", inputs, weight)[..., 0] + bias[0]
    scores = jax.nn.relu(key_z)
    if attention_mask is not None:
        scores = scores + attention_mask
    scores = jax.nn.softmax(scores / math.sqrt(B), axis=-1)
    reps = jnp.sum(inputs * scores[..., None], axis=1)
    return reps, scores


if __name__ == "__main__":
    # Small shapes consistent with the module: batch=2, seq=8, hidden=32.
    B, S, H = 2, 8, 32
    key = jax.random.PRNGKey(0)
    kx, kw, kb, km = jax.random.split(key, 4)

    x = jax.random.normal(kx, (B, S, H), dtype=jnp.float32)
    w = jax.random.normal(kw, (1, H), dtype=jnp.float32) * (1.0 / math.sqrt(H))
    b = jax.random.normal(kb, (1,), dtype=jnp.float32) * 0.1
    mask = jnp.where(jax.random.uniform(km, (B, S)) > 0.25, 0.0, -1e9
                     ).astype(jnp.float32)

    # With mask.
    reps, scores = latent_self_attention(x, w, b, mask)
    jax.block_until_ready((reps, scores))
    ref_reps, ref_scores = _reference(x, w, b, mask)
    assert jnp.allclose(reps, ref_reps, atol=2e-3, rtol=2e-3), "reps mismatch (masked)"
    assert jnp.allclose(scores, ref_scores, atol=2e-3, rtol=2e-3), "scores mismatch (masked)"

    # Without mask (mask-free kernel variant).
    reps2, scores2 = latent_self_attention(x, w, b, None)
    jax.block_until_ready((reps2, scores2))
    ref_reps2, ref_scores2 = _reference(x, w, b, None)
    assert jnp.allclose(reps2, ref_reps2, atol=2e-3, rtol=2e-3), "reps mismatch (no mask)"
    assert jnp.allclose(scores2, ref_scores2, atol=2e-3, rtol=2e-3), "scores mismatch (no mask)"

    print("KERNEL_OK")
</pallas_src>

<mosaic_0001>
module attributes {stable_mosaic.version = 11 : i64} {
  func.func @_kernel_with_mask(%arg0: i32, %arg1: i32, %arg2: memref<2x8x32xf32, #tpu.memory_space<vmem>>, %arg3: memref<1x32xf32, #tpu.memory_space<vmem>>, %arg4: memref<2x8xf32, #tpu.memory_space<vmem>>, %arg5: memref<1x1xf32, #tpu.memory_space<smem>>, %arg6: memref<2x32xf32, #tpu.memory_space<vmem>>, %arg7: memref<2x8xf32, #tpu.memory_space<vmem>>, %arg8: memref<1x2x1xf32, #tpu.memory_space<vmem>>, %arg9: memref<2x1xf32, #tpu.memory_space<vmem>>, %arg10: memref<2x1xf32, #tpu.memory_space<vmem>>, %arg11: memref<2x32xf32, #tpu.memory_space<vmem>>) attributes {dimension_semantics = [#tpu.dimension_semantics<parallel>, #tpu.dimension_semantics<arbitrary>], iteration_bounds = array<i64: 1, 1>, scalar_prefetch = 0 : i64, scratch_operands = 4 : i64, tpu.core_type = #tpu.core_type<tc>, window_params = [{transform_indices = @transform_0, window_bounds = array<i64: 2, 8, 32>}, {pipeline_mode = #tpu.pipeline_mode<synchronous>, transform_indices = @transform_1, window_bounds = array<i64: 1, 32>}, {transform_indices = @transform_2, window_bounds = array<i64: 2, 8>}, {transform_indices = @transform_3, window_bounds = array<i64: 1, 1>}, {transform_indices = @transform_4, window_bounds = array<i64: 2, 32>}, {transform_indices = @transform_5, window_bounds = array<i64: 2, 8>}]} {
    %c0_i32 = arith.constant 0 : i32
    %0 = arith.cmpi eq, %arg1, %c0_i32 : i32
    %1 = arith.extui %0 : i1 to i32
    %c0_i32_0 = arith.constant 0 : i32
    %2 = arith.cmpi ne, %1, %c0_i32_0 : i32
    scf.if %2 {
      %cst_28 = arith.constant 0xFF800000 : f32
      %46 = vector.broadcast %cst_28 : f32 to vector<2x1xf32>
      %c0_29 = arith.constant 0 : index
      %c0_30 = arith.constant 0 : index
      %47 = vector.load %arg9[%c0_29, %c0_30] : memref<2x1xf32, #tpu.memory_space<vmem>>, vector<2x1xf32>
      tpu.vector_store %arg9[%c0_29, %c0_30], %46 {strides = array<i32>} : memref<2x1xf32, #tpu.memory_space<vmem>>, vector<2x1xf32>,
      %cst_31 = arith.constant 0.000000e+00 : f32
      %48 = vector.broadcast %cst_31 : f32 to vector<2x1xf32>
      %c0_32 = arith.constant 0 : index
      %c0_33 = arith.constant 0 : index
      %49 = vector.load %arg10[%c0_32, %c0_33] : memref<2x1xf32, #tpu.memory_space<vmem>>, vector<2x1xf32>
      tpu.vector_store %arg10[%c0_32, %c0_33], %48 {strides = array<i32>} : memref<2x1xf32, #tpu.memory_space<vmem>>, vector<2x1xf32>,
      %cst_34 = arith.constant 0.000000e+00 : f32
      %50 = vector.broadcast %cst_34 : f32 to vector<2x32xf32>
      %c0_35 = arith.constant 0 : index
      %c0_36 = arith.constant 0 : index
      %51 = vector.load %arg11[%c0_35, %c0_36] : memref<2x32xf32, #tpu.memory_space<vmem>>, vector<2x32xf32>
      tpu.vector_store %arg11[%c0_35, %c0_36], %50 {strides = array<i32>} : memref<2x32xf32, #tpu.memory_space<vmem>>, vector<2x32xf32>,
    } else {
    }
    %c0 = arith.constant 0 : index
    %c0_1 = arith.constant 0 : index
    %c0_2 = arith.constant 0 : index
    %3 = vector.load %arg2[%c0, %c0_1, %c0_2] : memref<2x8x32xf32, #tpu.memory_space<vmem>>, vector<2x8x32xf32>
    %c0_3 = arith.constant 0 : index
    %c0_4 = arith.constant 0 : index
    %4 = vector.load %arg3[%c0_3, %c0_4] : memref<1x32xf32, #tpu.memory_space<vmem>>, vector<1x32xf32>
    %5 = vector.shape_cast %4 : vector<1x32xf32> to vector<32xf32>
    %c0_5 = arith.constant 0 : index
    %c0_6 = arith.constant 0 : index
    %6 = memref.load %arg5[%c0_5, %c0_6] : memref<1x1xf32, #tpu.memory_space<smem>>
    %7 = vector.shape_cast %5 : vector<32xf32> to vector<1x1x32xf32>
    %8 = vector.broadcast %7 : vector<1x1x32xf32> to vector<2x8x32xf32>
    %9 = arith.mulf %3, %8 : vector<2x8x32xf32>
    %cst = arith.constant dense<0.000000e+00> : vector<2x8xf32>
    %10 = vector.multi_reduction <add>, %9, %cst [2] : vector<2x8x32xf32> to vector<2x8xf32>
    %11 = vector.broadcast %6 : f32 to vector<2x8xf32>
    %12 = arith.addf %10, %11 : vector<2x8xf32>
    %cst_7 = arith.constant 0.000000e+00 : f32
    %13 = vector.broadcast %cst_7 : f32 to vector<2x8xf32>
    %14 = arith.maximumf %12, %13 : vector<2x8xf32>
    %c0_8 = arith.constant 0 : index
    %c0_9 = arith.constant 0 : index
    %15 = vector.load %arg4[%c0_8, %c0_9] : memref<2x8xf32, #tpu.memory_space<vmem>>, vector<2x8xf32>
    %16 = arith.addf %14, %15 : vector<2x8xf32>
    %cst_10 = arith.constant 0.707106769 : f32
    %17 = vector.broadcast %cst_10 : f32 to vector<2x8xf32>
    %18 = arith.mulf %16, %17 : vector<2x8xf32>
    %c0_11 = arith.constant 0 : index
    %c0_12 = arith.constant 0 : index
    %19 = vector.load %arg9[%c0_11, %c0_12] : memref<2x1xf32, #tpu.memory_space<vmem>>, vector<2x1xf32>
    %cst_13 = arith.constant dense<0xFF800000> : vector<2xf32>
    %20 = vector.multi_reduction <maximumf>, %18, %cst_13 [1] : vector<2x8xf32> to vector<2xf32>
    %21 = vector.shape_cast %20 : vector<2xf32> to vector<2x1xf32>
    %22 = arith.maximumf %19, %21 : vector<2x1xf32>
    %23 = arith.subf %19, %22 : vector<2x1xf32>
    %24 = math.exp %23 : vector<2x1xf32>
    %25 = vector.broadcast %22 : vector<2x1xf32> to vector<2x8xf32>
    %26 = arith.subf %18, %25 : vector<2x8xf32>
    %27 = math.exp %26 : vector<2x8xf32>
    %c0_14 = arith.constant 0 : index
    %c0_15 = arith.constant 0 : index
    %28 = vector.load %arg10[%c0_14, %c0_15] : memref<2x1xf32, #tpu.memory_space<vmem>>, vector<2x1xf32>
    %29 = arith.mulf %24, %28 : vector<2x1xf32>
    %cst_16 = arith.constant dense<0.000000e+00> : vector<2xf32>
    %30 = vector.multi_reduction <add>, %27, %cst_16 [1] : vector<2x8xf32> to vector<2xf32>
    %31 = vector.shape_cast %30 : vector<2xf32> to vector<2x1xf32>
    %32 = arith.addf %29, %31 : vector<2x1xf32>
    %c0_17 = arith.constant 0 : index
    %c0_18 = arith.constant 0 : index
    %33 = vector.load %arg10[%c0_17, %c0_18] : memref<2x1xf32, #tpu.memory_space<vmem>>, vector<2x1xf32>
    tpu.vector_store %arg10[%c0_17, %c0_18], %32 {strides = array<i32>} : memref<2x1xf32, #tpu.memory_space<vmem>>, vector<2x1xf32>,
    %34 = vector.shape_cast %27 : vector<2x8xf32> to vector<2x1x8xf32>
    "tpu.trace_start"() <{level = 10 : i32, message = "bqs,bsh->bqh"}> : () -> ()
    %cst_19 = arith.constant dense<0.000000e+00> : vector<2x1x32xf32>
    %35 = tpu.matmul %34, %3, %cst_19 {dimension_numbers = #tpu.dot_dimension_numbers<[2], [1], [1], [2], [0, 0, 0, 1, 1, 2], [0], [0]>} : vector<2x1x8xf32>, vector<2x8x32xf32>, vector<2x1x32xf32> -> vector<2x1x32xf32>
    "tpu.trace_stop"() : () -> ()
    %36 = vector.shape_cast %35 : vector<2x1x32xf32> to vector<2x32xf32>
    %c0_20 = arith.constant 0 : index
    %c0_21 = arith.constant 0 : index
    %37 = vector.load %arg11[%c0_20, %c0_21] : memref<2x32xf32, #tpu.memory_space<vmem>>, vector<2x32xf32>
    %38 = vector.broadcast %24 : vector<2x1xf32> to vector<2x32xf32>
    %39 = arith.mulf %38, %37 : vector<2x32xf32>
    %40 = arith.addf %39, %36 : vector<2x32xf32>
    %c0_22 = arith.constant 0 : index
    %c0_23 = arith.constant 0 : index
    %41 = vector.load %arg11[%c0_22, %c0_23] : memref<2x32xf32, #tpu.memory_space<vmem>>, vector<2x32xf32>
    tpu.vector_store %arg11[%c0_22, %c0_23], %40 {strides = array<i32>} : memref<2x32xf32, #tpu.memory_space<vmem>>, vector<2x32xf32>,
    %c0_24 = arith.constant 0 : index
    %c0_25 = arith.constant 0 : index
    %42 = vector.load %arg9[%c0_24, %c0_25] : memref<2x1xf32, #tpu.memory_space<vmem>>, vector<2x1xf32>
    tpu.vector_store %arg9[%c0_24, %c0_25], %22 {strides = array<i32>} : memref<2x1xf32, #tpu.memory_space<vmem>>, vector<2x1xf32>,
    %c0_i32_26 = arith.constant 0 : i32
    %43 = arith.cmpi eq, %arg1, %c0_i32_26 : i32
    %44 = arith.extui %43 : i1 to i32
    %c0_i32_27 = arith.constant 0 : i32
    %45 = arith.cmpi ne, %44, %c0_i32_27 : i32
    scf.if %45 {
      %c0_28 = arith.constant 0 : index
      %c0_29 = arith.constant 0 : index
      %46 = vector.load %arg10[%c0_28, %c0_29] : memref<2x1xf32, #tpu.memory_space<vmem>>, vector<2x1xf32>
      %47 = tpu.reciprocal %46 {approx = true} : vector<2x1xf32> -> vector<2x1xf32>
      %c0_30 = arith.constant 0 : index
      %c0_31 = arith.constant 0 : index
      %48 = vector.load %arg11[%c0_30, %c0_31] : memref<2x32xf32, #tpu.memory_space<vmem>>, vector<2x32xf32>
      %49 = vector.broadcast %47 : vector<2x1xf32> to vector<2x32xf32>
      %50 = arith.mulf %48, %49 : vector<2x32xf32>
      %c0_32 = arith.constant 0 : index
      %c0_33 = arith.constant 0 : index
      %51 = vector.load %arg6[%c0_32, %c0_33] : memref<2x32xf32, #tpu.memory_space<vmem>>, vector<2x32xf32>
      tpu.vector_store %arg6[%c0_32, %c0_33], %50 {strides = array<i32>} : memref<2x32xf32, #tpu.memory_space<vmem>>, vector<2x32xf32>,
      %52 = vector.broadcast %47 : vector<2x1xf32> to vector<2x8xf32>
      %53 = arith.mulf %27, %52 : vector<2x8xf32>
      %c0_34 = arith.constant 0 : index
      %c0_35 = arith.constant 0 : index
      %54 = vector.load %arg7[%c0_34, %c0_35] : memref<2x8xf32, #tpu.memory_space<vmem>>, vector<2x8xf32>
      tpu.vector_store %arg7[%c0_34, %c0_35], %53 {strides = array<i32>} : memref<2x8xf32, #tpu.memory_space<vmem>>, vector<2x8xf32>,
    } else {
    }
    return
  }
  func.func @transform_0(%arg0: i32, %arg1: i32) -> (i32, i32, i32) {
    %c0_i32 = arith.constant 0 : i32
    %c0_i32_0 = arith.constant 0 : i32
    return %arg0, %arg1, %c0_i32 : i32, i32, i32
  }
  func.func @transform_1(%arg0: i32, %arg1: i32) -> (i32, i32) {
    %c0_i32 = arith.constant 0 : i32
    %c0_i32_0 = arith.constant 0 : i32
    %c0_i32_1 = arith.constant 0 : i32
    return %c0_i32, %c0_i32_0 : i32, i32
  }
  func.func @transform_2(%arg0: i32, %arg1: i32) -> (i32, i32) {
    %c0_i32 = arith.constant 0 : i32
    return %arg0, %arg1 : i32, i32
  }
  func.func @transform_3(%arg0: i32, %arg1: i32) -> (i32, i32) {
    %c0_i32 = arith.constant 0 : i32
    %c0_i32_0 = arith.constant 0 : i32
    %c0_i32_1 = arith.constant 0 : i32
    return %c0_i32, %c0_i32_0 : i32, i32
  }
  func.func @transform_4(%arg0: i32, %arg1: i32) -> (i32, i32) {
    %c0_i32 = arith.constant 0 : i32
    %c0_i32_0 = arith.constant 0 : i32
    return %arg0, %c0_i32 : i32, i32
  }
  func.func @transform_5(%arg0: i32, %arg1: i32) -> (i32, i32) {
    %c0_i32 = arith.constant 0 : i32
    %c0_i32_0 = arith.constant 0 : i32
    return %arg0, %c0_i32 : i32, i32
  }
}

</mosaic_0001>

<llo_original>
// kernel: tpu_custom_call.1
$region0: #{tpu_custom_call.1}
  #allocation0 [shape = 'u32[]', space=smem, size = 0x4, offset = 0x4, fixed_abs, tag = 'smem constant byte address 0x4 - core index']
  #allocation1 [shape = 'u32[144,128]{1,0:T(1,128)}', space=vmem, size = 0x12000, scoped, tag = 'internal scratch']
  #allocation2 [shape = 'f32[1,2,1]{2,1,0:T(2,128)}', space=vmem, size = 0x400, scoped, tag = 'scratch operand']
  #allocation3 [shape = 'f32[2,1]{1,0:T(2,128)}', space=vmem, size = 0x400, scoped, tag = 'scratch operand']
  #allocation4 [shape = 'f32[2,1]{1,0:T(2,128)}', space=vmem, size = 0x400, scoped, tag = 'scratch operand']
  #allocation5 [shape = 'f32[2,32]{1,0:T(2,128)}', space=vmem, size = 0x400, scoped, tag = 'scratch operand']
  #allocation6 [shape = 'f32[1,1]{1,0:T(1,128)S(6)}', space=smem, size = 0x200, scoped, tag = 'scoped memory for tpu_custom_call.1']
  %s0 = inlined_call_operand.hbm [shape: f32[2,8,32], index: 0, kind: input, shape index: {}]
  %s1 = inlined_call_operand.vmem [shape: f32[1,32], index: 1, kind: input, shape index: {}]
  %s2 = inlined_call_operand.vmem [shape: f32[2,8], index: 2, kind: input, shape index: {}]
  %s3 = inlined_call_operand.<no memory space> [shape: f32[1,1], index: 3, kind: input, shape index: {}]
  %s4 = inlined_call_operand.hbm [shape: f32[2,32], index: 4, kind: output, shape index: {0}]
  %s5 = inlined_call_operand.hbm [shape: f32[2,8], index: 5, kind: output, shape index: {1}]
  %6 = xla_tuple %s4, %s5
  %s7 = sld [smem:[#allocation0]]
  $region46: #{tpu_custom_call.1} parent=0
    _
  %s9 = ssub.s32 1, %s7
  %s10 = scalar_select 0, %s9, %s7
  %11 = sst [smem:[#allocation6]] %s3
  $region1: #{tpu_custom_call.1} parent=0
    #allocation7 [shape = 'u8[8192]{0}', space=vmem, size = 0x2000, scoped, tag = 'input window, operand 0, single buffered']
    #allocation8 [shape = 's32[1]{0}', space=sflag, size = 0x4, scoped, tag = 'scoped memory for tpu_custom_call.1']
    #allocation9 [shape = 's32[1]{0}', space=sflag, size = 0x4, scoped, tag = 'scoped memory for tpu_custom_call.1']
    #allocation10 [shape = 'u8[1024]{0}', space=vmem, size = 0x400, scoped, tag = 'output window, operand 0, single buffered']
    #allocation11 [shape = 'u8[1024]{0}', space=vmem, size = 0x400, scoped, tag = 'output window, operand 1, single buffered']
    #allocation12 [shape = 's32[1]{0}', space=sflag, size = 0x4, scoped, tag = 'scoped memory for tpu_custom_call.1']
    %12 = vsyncpa [#allocation8], 0
    %13 = vsyncpa [#allocation9], 0
    %14 = vsyncpa [#allocation12], 0
    // Predicated region
    $region2: #{tpu_custom_call.1} parent=1 // pred_check
      _
    $region3: #{tpu_custom_call.1} parent=1 // pred_check_branch
      %16 = sbr.rel (0) target = $region5
    $region4: #{tpu_custom_call.1} parent=1 // pred_region
      %s18 = ssub.s32 256, 256
      %19 = vsyncadd [#allocation8], %s18
      %s20 = sshll.u32 [#allocation7], 4
      %s21 = int_to_ptr.vmem [resolvable:$true] %s20
      %26 = dma.hbm_to_vmem [thread:$0]  %s0, 256, %s21, [#allocation8], 128, 128, 8
    $region5: #{tpu_custom_call.1} parent=1 // pred_fallthru
      _
    // Predicated region
    $region6: #{tpu_custom_call.1} parent=1 // pred_check
      _
    $region7: #{tpu_custom_call.1} parent=1 // pred_check_branch
      %28 = sbr.rel (0) target = $region9
    $region8: #{tpu_custom_call.1} parent=1 // pred_region
      _
    $region9: #{tpu_custom_call.1} parent=1 // pred_fallthru
      _
    // Predicated region
    $region10: #{tpu_custom_call.1} parent=1 // pred_check
      _
    $region11: #{tpu_custom_call.1} parent=1 // pred_check_branch
      %30 = sbr.rel (0) target = $region13
    $region12: #{tpu_custom_call.1} parent=1 // pred_region
      _
    $region13: #{tpu_custom_call.1} parent=1 // pred_fallthru
      _
    // Predicated region
    $region14: #{tpu_custom_call.1} parent=1 // pred_check
      _
    $region15: #{tpu_custom_call.1} parent=1 // pred_check_branch
      %32 = sbr.rel (0) target = $region17
    $region16: #{tpu_custom_call.1} parent=1 // pred_region
      _
    $region17: #{tpu_custom_call.1} parent=1 // pred_fallthru
      _
    // Predicated region
    $region18: #{tpu_custom_call.1} parent=1 // pred_check
      _
    $region19: #{tpu_custom_call.1} parent=1 // pred_check_branch
      %34 = sbr.rel (0) target = $region21
    $region20: #{tpu_custom_call.1} parent=1 // pred_region
      %35 = dma.done [#allocation8], 256
    $region21: #{tpu_custom_call.1} parent=1 // pred_fallthru
      _
    %p36 = scmp.eq.s32.totalorder 0, 0
    // Predicated region
    $region22: #{tpu_custom_call.1} parent=1 // pred_check
      %p37 = pneg %p36
    $region23: #{tpu_custom_call.1} parent=1 // pred_check_branch
      %39 = sbr.rel (%p37) target = $region25
    $region24: #{tpu_custom_call.1} parent=1 // pred_region
      %vm40 = vcmask 1024
      %41 = vst.msk [vmem:[#allocation3] sm:$0x3] %vm40, -inf
      %42 = vst.msk [vmem:[#allocation4] sm:$0x3] %vm40, 0.0
      %vm43 = vcmask 254976
      %44 = vst.msk [vmem:[#allocation5] sm:$0x3] %vm43, 0.0
    $region25: #{tpu_custom_call.1} parent=1 // pred_fallthru
      _
    %v45 = vld [vmem:[#allocation7] sm:$0xff]
    %v46 = vld [vmem:[#allocation7 + $0x8] sm:$0xff]
    %v47 = vld [vmem:[%s1] sm:$0x1]
    %s48 = sld [smem:[#allocation6]]
    %v50 = vlaneseq
    %v51 = vshrl.u32 %v50, 7
    %v52 = vsub.s32 0, %v51
    %v53 = vrot.slane %v47, %v52
    %v55 = vmul.f32 %v45, %v53
    %v56 = vmul.f32 %v46, %v53
    %vm57 = vcmask 261120
    %v58 = vsel %vm57, %v55, 0.0
    %59 = vadd.xlane.f32.xlu0 %v58
    %v60 = vpop.xlane.xlu0 %59
    %v61 = vsel %vm57, %v56, 0.0
    %62 = vadd.xlane.f32.xlu0 %v61
    %v63 = vpop.xlane.xlu0 %62
    %v64 = vstv %s48
    %v65 = vadd.f32 %v60, %v64
    %v66 = vadd.f32 %v63, %v64
    %v67 = vmax.f32 %v65, 0.0
    %v68 = vmax.f32 %v66, 0.0
    %v69 = vld [vmem:[%s2] sm:$0x3]
    %v71 = vlaneseq
    %v72 = vshrl.u32 %v71, 7
    %v73 = vsub.s32 0, %v72
    %v74 = vrot.slane %v69, %v73
    %76 = vbcast.lane.b32.xlu0 %v74, 256
    %v77 = vpop.permute.xlu0 %76
    %v78 = vlaneseq
    %v79 = vshrl.u32 %v78, 7
    %v80 = vsub.s32 1, %v79
    %v81 = vrot.slane %v69, %v80
    %83 = vbcast.lane.b32.xlu0 %v81, 256
    %v84 = vpop.permute.xlu0 %83
    %v87 = vadd.f32 %v67, %v77
    %v88 = vadd.f32 %v68, %v84
    %v89 = vmul.f32 %v87, 0.70710677
    %v90 = vmul.f32 %v88, 0.70710677
    %v91 = vld [vmem:[#allocation3] sm:$0x3]
    %94 = vset.pattern.permute.xlu0 0
    %95 = vperm.xlu0 %94, %v89
    %v96 = vpop.permute.xlu0 %95
    %97 = vset.pattern.permute.xlu0 0
    %98 = vperm.xlu0 %97, %v90
    %v99 = vpop.permute.xlu0 %98
    %v100 = vlaneseq
    %v101 = vand.u32 %v100, 127
    %v102 = vlaneseq
    %v103 = vshrl.u32 %v102, 7
    %v104 = vsub.s32 %v101, %v103
    %v105 = vrot.slane %v96, %v104
    %v106 = vlaneseq
    %v107 = vshrl.u32 %v106, 7
    %v108 = vsub.s32 %v101, %v107
    %v109 = vrot.slane %v99, %v108
    %vm110 = vcmask 1041409
    %v111 = vsel %vm110, %v109, %v105
    %vm113 = vcmask 58368
    %v114 = vsel %vm113, %v111, -inf
    %115 = vmax.xlane.f32.xlu0 %v114
    %v116 = vpop.xlane.xlu0 %115
    %v117 = vmax.f32 %v91, %v116
    %v118 = vsub.f32 %v91, %v117
    %v119 = vmul.f32 %v118, 1.442695
    %v120 = vpow.pop %v119
    %122 = vset.pattern.permute.xlu0 0
    %123 = vperm.xlu0 %122, %v117
    %v124 = vpop.permute.xlu0 %123
    %v125 = vlaneseq
    %v126 = vshrl.u32 %v125, 7
    %v127 = vsub.s32 0, %v126
    %v128 = vrot.slane %v124, %v127
    %v129 = vlaneseq
    %v130 = vshrl.u32 %v129, 7
    %v131 = vsub.s32 1, %v130
    %v132 = vrot.slane %v124, %v131
    %v135 = vsub.f32 %v89, %v128
    %v136 = vsub.f32 %v90, %v132
    %v137 = vmul.f32 %v135, 1.442695
    %v138 = vpow.pop %v137
    %v139 = vmul.f32 %v136, 1.442695
    %v140 = vpow.pop %v139
    %v141 = vld [vmem:[#allocation4] sm:$0x3]
    %v142 = vmul.f32 %v120, %v141
    %145 = vset.pattern.permute.xlu0 0
    %146 = vperm.xlu0 %145, %v138
    %v147 = vpop.permute.xlu0 %146
    %148 = vset.pattern.permute.xlu0 0
    %149 = vperm.xlu0 %148, %v140
    %v150 = vpop.permute.xlu0 %149
    %v151 = vlaneseq
    %v152 = vshrl.u32 %v151, 7
    %v153 = vsub.s32 %v101, %v152
    %v154 = vrot.slane %v147, %v153
    %v155 = vlaneseq
    %v156 = vshrl.u32 %v155, 7
    %v157 = vsub.s32 %v101, %v156
    %v158 = vrot.slane %v150, %v157
    %v159 = vsel %vm110, %v158, %v154
    %v161 = vsel %vm113, %v159, 0.0
    %162 = vadd.xlane.f32.xlu0 %v161
    %v163 = vpop.xlane.xlu0 %162
    %v164 = vadd.f32 %v142, %v163
    %vm165 = vcmask 1024
    %166 = vst.msk [vmem:[#allocation4] sm:$0x3] %vm165, %v164
    %vm167 = vcmask 64512
    %v168 = vsel %vm167, %v154, 0
    %170 = vmatprep.subr.mxu0 0.0
    %171 = vmatpush1.msra.mxu0 %v45
    %172 = vmatprep.subr.mxu0 0.0
    %173 = vmatpush1.msra.mxu0 0.0
    %174 = vmatprep.subr.mxu0 0.0
    %175 = vmatpush1.msra.mxu0 0.0
    %176 = vmatprep.subr.mxu0 0.0
    %177 = vmatpush1.msra.mxu0 0.0
    %178 = vmatprep.subr.mxu0 0.0
    %179 = vmatpush1.msra.mxu0 0.0
    %180 = vmatprep.subr.mxu0 0.0
    %181 = vmatpush1.msra.mxu0 0.0
    %182 = vmatprep.subr.mxu0 0.0
    %183 = vmatpush1.msra.mxu0 0.0
    %184 = vmatprep.subr.mxu0 0.0
    %185 = vmatpush1.msra.mxu0 0.0
    %186 = vmatprep.subr.mxu0 0.0
    %187 = vmatpush1.msra.mxu0 0.0
    %188 = vmatprep.subr.mxu0 0.0
    %189 = vmatpush1.msra.mxu0 0.0
    %190 = vmatprep.subr.mxu0 0.0
    %191 = vmatpush1.msra.mxu0 0.0
    %192 = vmatprep.subr.mxu0 0.0
    %193 = vmatpush1.msra.mxu0 0.0
    %194 = vmatprep.subr.mxu0 0.0
    %195 = vmatpush1.msra.mxu0 0.0
    %196 = vmatprep.subr.mxu0 0.0
    %197 = vmatpush1.msra.mxu0 0.0
    %198 = vmatprep.subr.mxu0 0.0
    %199 = vmatpush1.msra.mxu0 0.0
    %200 = vmatprep.subr.mxu0 0.0
    %201 = vmatpush1.msra.mxu0 0.0
    %202 = vmatprep.subr.mxu0 0.0
    %203 = vmatpush1.msra.mxu0 0.0
    %204 = vmatprep.subr.mxu0 0.0
    %205 = vmatpush1.msra.mxu0 0.0
    %206 = vmatprep.subr.mxu0 0.0
    %207 = vmatpush1.msra.mxu0 0.0
    %208 = vmatprep.subr.mxu0 0.0
    %209 = vmatpush1.msra.mxu0 0.0
    %210 = vmatprep.subr.mxu0 0.0
    %211 = vmatpush1.msra.mxu0 0.0
    %212 = vmatprep.subr.mxu0 0.0
    %213 = vmatpush1.msra.mxu0 0.0
    %214 = vmatprep.subr.mxu0 0.0
    %215 = vmatpush1.msra.mxu0 0.0
    %216 = vmatprep.subr.mxu0 0.0
    %217 = vmatpush1.msra.mxu0 0.0
    %218 = vmatprep.subr.mxu0 0.0
    %219 = vmatpush1.msra.mxu0 0.0
    %220 = vmatprep.subr.mxu0 0.0
    %221 = vmatpush1.msra.mxu0 0.0
    %222 = vmatprep.subr.mxu0 0.0
    %223 = vmatpush1.msra.mxu0 0.0
    %224 = vmatprep.subr.mxu0 0.0
    %225 = vmatpush1.msra.mxu0 0.0
    %226 = vmatprep.subr.mxu0 0.0
    %227 = vmatpush1.msra.mxu0 0.0
    %228 = vmatprep.subr.mxu0 0.0
    %229 = vmatpush1.msra.mxu0 0.0
    %230 = vmatprep.subr.mxu0 0.0
    %231 = vmatpush1.msra.mxu0 0.0
    %232 = vmatprep.subr.mxu0 0.0
    %233 = vmatpush1.msra.mxu0 0.0
    %234 = vmatprep.mubr.f32.mxu0 0.0
    %235 = vmatmul.mubr.f32.gmra.mrb[0].mxu0 %v168
    %v236 = vpop.f32.mrb[0].mxu0
    %v237 = vadd.f32 0.0, %v236
    %v238 = vpop.f32.mrb[0].mxu0
    %239 = vdwg.mxu0
    %v240 = vsel %vm167, %v158, 0
    %242 = vmatprep.subr.mxu0 0.0
    %243 = vmatpush1.msra.mxu0 %v46
    %244 = vmatprep.subr.mxu0 0.0
    %245 = vmatpush1.msra.mxu0 0.0
    %246 = vmatprep.subr.mxu0 0.0
    %247 = vmatpush1.msra.mxu0 0.0
    %248 = vmatprep.subr.mxu0 0.0
    %249 = vmatpush1.msra.mxu0 0.0
    %250 = vmatprep.subr.mxu0 0.0
    %251 = vmatpush1.msra.mxu0 0.0
    %252 = vmatprep.subr.mxu0 0.0
    %253 = vmatpush1.msra.mxu0 0.0
    %254 = vmatprep.subr.mxu0 0.0
    %255 = vmatpush1.msra.mxu0 0.0
    %256 = vmatprep.subr.mxu0 0.0
    %257 = vmatpush1.msra.mxu0 0.0
    %258 = vmatprep.subr.mxu0 0.0
    %259 = vmatpush1.msra.mxu0 0.0
    %260 = vmatprep.subr.mxu0 0.0
    %261 = vmatpush1.msra.mxu0 0.0
    %262 = vmatprep.subr.mxu0 0.0
    %263 = vmatpush1.msra.mxu0 0.0
    %264 = vmatprep.subr.mxu0 0.0
    %265 = vmatpush1.msra.mxu0 0.0
    %266 = vmatprep.subr.mxu0 0.0
    %267 = vmatpush1.msra.mxu0 0.0
    %268 = vmatprep.subr.mxu0 0.0
    %269 = vmatpush1.msra.mxu0 0.0
    %270 = vmatprep.subr.mxu0 0.0
    %271 = vmatpush1.msra.mxu0 0.0
    %272 = vmatprep.subr.mxu0 0.0
    %273 = vmatpush1.msra.mxu0 0.0
    %274 = vmatprep.subr.mxu0 0.0
    %275 = vmatpush1.msra.mxu0 0.0
    %276 = vmatprep.subr.mxu0 0.0
    %277 = vmatpush1.msra.mxu0 0.0
    %278 = vmatprep.subr.mxu0 0.0
    %279 = vmatpush1.msra.mxu0 0.0
    %280 = vmatprep.subr.mxu0 0.0
    %281 = vmatpush1.msra.mxu0 0.0
    %282 = vmatprep.subr.mxu0 0.0
    %283 = vmatpush1.msra.mxu0 0.0
    %284 = vmatprep.subr.mxu0 0.0
    %285 = vmatpush1.msra.mxu0 0.0
    %286 = vmatprep.subr.mxu0 0.0
    %287 = vmatpush1.msra.mxu0 0.0
    %288 = vmatprep.subr.mxu0 0.0
    %289 = vmatpush1.msra.mxu0 0.0
    %290 = vmatprep.subr.mxu0 0.0
    %291 = vmatpush1.msra.mxu0 0.0
    %292 = vmatprep.subr.mxu0 0.0
    %293 = vmatpush1.msra.mxu0 0.0
    %294 = vmatprep.subr.mxu0 0.0
    %295 = vmatpush1.msra.mxu0 0.0
    %296 = vmatprep.subr.mxu0 0.0
    %297 = vmatpush1.msra.mxu0 0.0
    %298 = vmatprep.subr.mxu0 0.0
    %299 = vmatpush1.msra.mxu0 0.0
    %300 = vmatprep.subr.mxu0 0.0
    %301 = vmatpush1.msra.mxu0 0.0
    %302 = vmatprep.subr.mxu0 0.0
    %303 = vmatpush1.msra.mxu0 0.0
    %304 = vmatprep.subr.mxu0 0.0
    %305 = vmatpush1.msra.mxu0 0.0
    %306 = vmatprep.mubr.f32.mxu0 0.0
    %307 = vmatmul.mubr.f32.gmra.mrb[0].mxu0 %v240
    %v308 = vpop.f32.mrb[0].mxu0
    %v309 = vadd.f32 0.0, %v308
    %v310 = vpop.f32.mrb[0].mxu0
    %311 = vdwg.mxu0
    %v312 = vld [vmem:[#allocation5] sm:$0x3]
    %314 = vset.pattern.permute.xlu0 0
    %315 = vperm.xlu0 %314, %v120
    %v316 = vpop.permute.xlu0 %315
    %v318 = vmul.f32 %v316, %v312
    %v321 = vrot.slane %v309, 7
    %v322 = vsel %vm110, %v321, %v237
    %v324 = vadd.f32 %v318, %v322
    %vm325 = vcmask 254976
    %326 = vst.msk [vmem:[#allocation5] sm:$0x3] %vm325, %v324
    %327 = vst.msk [vmem:[#allocation3] sm:$0x3] %vm165, %v117
    // Predicated region
    $region26: #{tpu_custom_call.1} parent=1 // pred_check
      %p328 = pneg %p36
    $region27: #{tpu_custom_call.1} parent=1 // pred_check_branch
      %330 = sbr.rel (%p328) target = $region29
    $region28: #{tpu_custom_call.1} parent=1 // pred_region
      %v331 = vld [vmem:[#allocation4] sm:$0x3]
      %v332 = vrcp.pop %v331
      %v333 = vld [vmem:[#allocation5] sm:$0x3]
      %335 = vset.pattern.permute.xlu0 0
      %336 = vperm.xlu0 %335, %v332
      %v337 = vpop.permute.xlu0 %336
      %v339 = vmul.f32 %v333, %v337
      %340 = vst.msk [vmem:[#allocation10] sm:$0x3] %vm325, %v339
      %v341 = vlaneseq
      %v342 = vshrl.u32 %v341, 7
      %v343 = vsub.s32 0, %v342
      %v344 = vrot.slane %v337, %v343
      %v345 = vlaneseq
      %v346 = vshrl.u32 %v345, 7
      %v347 = vsub.s32 1, %v346
      %v348 = vrot.slane %v337, %v347
      %v351 = vmul.f32 %v138, %v344
      %v352 = vmul.f32 %v140, %v348
      %355 = vset.pattern.permute.xlu0 0
      %356 = vperm.xlu0 %355, %v351
      %v357 = vpop.permute.xlu0 %356
      %358 = vset.pattern.permute.xlu0 0
      %359 = vperm.xlu0 %358, %v352
      %v360 = vpop.permute.xlu0 %359
      %v361 = vlaneseq
      %v362 = vshrl.u32 %v361, 7
      %v363 = vsub.s32 %v101, %v362
      %v364 = vrot.slane %v357, %v363
      %v365 = vlaneseq
      %v366 = vshrl.u32 %v365, 7
      %v367 = vsub.s32 %v101, %v366
      %v368 = vrot.slane %v360, %v367
      %v369 = vsel %vm110, %v368, %v364
      %371 = vst.msk [vmem:[#allocation11] sm:$0x3] %vm113, %v369
    $region29: #{tpu_custom_call.1} parent=1 // pred_fallthru
      _
    // Predicated region
    $region30: #{tpu_custom_call.1} parent=1 // pred_check
      _
    $region31: #{tpu_custom_call.1} parent=1 // pred_check_branch
      %373 = sbr.rel (0) target = $region33
    $region32: #{tpu_custom_call.1} parent=1 // pred_region
      %s375 = ssub.s32 32, 32
      %376 = vsyncadd [#allocation9], %s375
      %s378 = sshll.u32 [#allocation10], 4
      %s379 = int_to_ptr.vmem [resolvable:$true] %s378
      %381 = dma.vmem_to_hbm [thread:$0]  %s379, 32, %s4, [#allocation9]
    $region33: #{tpu_custom_call.1} parent=1 // pred_fallthru
      _
    // Predicated region
    $region34: #{tpu_custom_call.1} parent=1 // pred_check
      _
    $region35: #{tpu_custom_call.1} parent=1 // pred_check_branch
      %383 = sbr.rel (0) target = $region37
    $region36: #{tpu_custom_call.1} parent=1 // pred_region
      %s385 = ssub.s32 32, 32
      %386 = vsyncadd [#allocation12], %s385
      %s388 = sshll.u32 [#allocation11], 4
      %s389 = int_to_ptr.vmem [resolvable:$true] %s388
      %391 = dma.vmem_to_hbm [thread:$0]  %s389, 32, %s5, [#allocation12]
    $region37: #{tpu_custom_call.1} parent=1 // pred_fallthru
      _
    // Predicated region
    $region38: #{tpu_custom_call.1} parent=1 // pred_check
      _
    $region39: #{tpu_custom_call.1} parent=1 // pred_check_branch
      %393 = sbr.rel (0) target = $region41
    $region40: #{tpu_custom_call.1} parent=1 // pred_region
      %394 = dma.done [#allocation9], 32
    $region41: #{tpu_custom_call.1} parent=1 // pred_fallthru
      _
    // Predicated region
    $region42: #{tpu_custom_call.1} parent=1 // pred_check
      _
    $region43: #{tpu_custom_call.1} parent=1 // pred_check_branch
      %396 = sbr.rel (0) target = $region45
    $region44: #{tpu_custom_call.1} parent=1 // pred_region
      %397 = dma.done [#allocation12], 32
    $region45: #{tpu_custom_call.1} parent=1 // pred_fallthru
      _
    %398 = vsyncpa [#allocation8], 1
    %399 = vsyncpa [#allocation9], 1
    %400 = vsyncpa [#allocation12], 1

</llo_original>
